<compile_context>
chip_gen: v6e
topology: v6e:2x2x1
jax: 0.10.0
libtpu: 0.0.40
codegen_flags: <defaults>
</compile_context>

<pallas_src>
import functools

import jax
import jax.numpy as jnp
from jax.experimental import pallas as pl
from jax.experimental.pallas import tpu as pltpu


def _round_up(a, m):
    return (a + m - 1) // m * m


def _physical_vmem_bytes():
    """Per-core VMEM capacity; conservative v7x default if query unavailable."""
    try:
        return int(pltpu.get_tpu_info().vmem_capacity_bytes)
    except Exception:
        return 64 << 20


def _cluster_memory_kernel(x_ref, feat_ref, lse_ref, xn_sc, m_sc, l_sc, *,
                           inv_temp, n_valid, needs_mask):
    """One (batch-tile, cluster-tile) grid step of the fused logsumexp."""
    ni = pl.program_id(1)
    nn = pl.num_programs(1)

    # Once per batch tile: init online-softmax state and hoist the row
    # normalization (1/temp folded into the scale) into VMEM scratch.
    # F.normalize eps: x / max(||x||, 1e-12) == x * rsqrt(max(||x||^2, 1e-24)).
    @pl.when(ni == 0)
    def _():
        x = x_ref[...].astype(jnp.float32)                          # (TB, Dp)
        sumsq = jnp.sum(x * x, axis=1, keepdims=True)               # (TB, 1)
        scale = jax.lax.rsqrt(jnp.maximum(sumsq, 1e-24)) * inv_temp
        xn_sc[...] = (x * scale).astype(xn_sc.dtype)                # MXU-native dtype
        m_sc[...] = jnp.full_like(m_sc, -jnp.inf)
        l_sc[...] = jnp.zeros_like(l_sc)

    # Logits for this cluster tile: contract over the last dim of both
    # operands (no transpose of features), f32 accumulation.
    s = jax.lax.dot_general(
        xn_sc[...], feat_ref[...],
        dimension_numbers=(((1,), (1,)), ((), ())),
        preferred_element_type=jnp.float32)                         # (TB, TN)

    if needs_mask:
        # Padded cluster columns (only the last tile has any). (1, TN) row
        # iota broadcast in the compare; skipped entirely when Np == N.
        tn = s.shape[1]
        col = ni * tn + jax.lax.broadcasted_iota(jnp.int32, (1, tn), 1)
        s = jnp.where(col < n_valid, s, -jnp.inf)

    # Online softmax statistics. Every tile contains >= 1 valid column
    # (Np - N < TN), so m_new is always finite.
    m_old = m_sc[...]
    m_new = jnp.maximum(m_old, jnp.max(s, axis=1, keepdims=True))
    alpha = jnp.exp(m_old - m_new)
    l_sc[...] = alpha * l_sc[...] + jnp.sum(jnp.exp(s - m_new), axis=1,
                                            keepdims=True)
    m_sc[...] = m_new

    @pl.when(ni == nn - 1)
    def _():
        lse_ref[...] = m_sc[...] + jnp.log(l_sc[...])


def prepare_features(features, *, block_n=1024, dtype=None):
    """Pad (and optionally cast to bf16) the memory bank ONCE at init.

    Returns (features_padded, n_valid, tn). Pass `block_n=tn` and
    `n_valid=n_valid` to cluster_memory_forward to hit its no-copy fast path.
    """
    N, D = features.shape
    Dp = _round_up(D, 128)
    TN = min(block_n, _round_up(N, 128))
    TN = _round_up(TN, 128)
    Np = _round_up(N, TN)
    f = features if dtype is None else features.astype(dtype)
    if (Np, Dp) != (N, D):
        f = jnp.pad(f, ((0, Np - N), (0, Dp - D)))
    return f, N, TN


def cluster_memory_forward(inputs, features, targets, temp=0.05, *,
                           block_b=512, block_n=1024, n_valid=None,
                           min_batch_tiles=1):
    """Pallas implementation of ClusterMemory.forward -> scalar CE loss.

    `features` may be the raw (N, D) bank or the output of prepare_features()
    (pre-padded / bf16-cast); `n_valid` is the true number of clusters when
    the bank is pre-padded. Set `min_batch_tiles=2` on v7x so the parallel
    batch axis can split across its two TensorCores.
    """
    B, D = inputs.shape
    Nf, Df = features.shape
    N = int(n_valid) if n_valid is not None else Nf
    assert N <= Nf
    inv_temp = 1.0 / float(temp)

    # ---- tile sizes / padded shapes (lane/sublane aligned) ----
    Dp = _round_up(D, 128)
    if Df not in (D, Dp):
        raise ValueError(f"features dim {Df} incompatible with inputs dim {D}")

    Bp8 = _round_up(B, 8)
    TB = min(block_b, Bp8)
    if min_batch_tiles > 1:
        TB = min(TB, max(8, _round_up(-(-Bp8 // min_batch_tiles), 8)))
    TB = _round_up(TB, 8)
    Bp = _round_up(B, TB)

    TN = _round_up(min(block_n, _round_up(N, 128)), 128)
    Np = _round_up(max(N, Nf), TN)
    needs_mask = (Np != N)

    # ---- operand padding (fast paths: no per-call copy when already aligned) ----
    x = inputs
    if (Bp, Dp) != (B, D):
        x = jnp.pad(x, ((0, Bp - B), (0, Dp - D)))
    f = features
    if (Nf, Df) != (Np, Dp):
        # Slow path: prefer prepare_features() once at init to avoid this
        # full-bank HBM copy on every forward call.
        f = jnp.pad(f, ((0, Np - Nf), (0, Dp - Df)))

    # ---- target logit in the wrapper: O(B*D) gather + dot (in f32) ----
    x32 = inputs.astype(jnp.float32)
    x_n32 = x32 * jax.lax.rsqrt(
        jnp.maximum(jnp.sum(x32 * x32, axis=1, keepdims=True), 1e-24))
    tgt_feat = features[targets][:, :D].astype(jnp.float32)
    tgt_logit = jnp.sum(x_n32 * tgt_feat, axis=1) * inv_temp            # (B,)

    # ---- VMEM budget (generation-aware) ----
    feat_bytes = jnp.dtype(f.dtype).itemsize
    in_bytes = jnp.dtype(x.dtype).itemsize
    vmem_need = (2 * TN * Dp * feat_bytes       # double-buffered feature stream
                 + 2 * TB * Dp * in_bytes       # resident input tile
                 + TB * Dp * feat_bytes         # hoisted x_n scratch
                 + 6 * TB * TN * 4              # logits temporaries (f32)
                 + (64 << 10))
    phys = _physical_vmem_bytes()
    vmem_limit = int(min(max(vmem_need + (4 << 20), 32 << 20),
                         int(phys * 0.8)))

    kernel = functools.partial(_cluster_memory_kernel,
                               inv_temp=inv_temp,
                               n_valid=N,
                               needs_mask=bool(needs_mask))

    n_b_tiles = Bp // TB
    cost = pl.CostEstimate(
        flops=2 * Bp * Np * Dp,
        transcendentals=Bp * Np,
        # features are re-streamed once per batch tile.
        bytes_accessed=(n_b_tiles * Np * Dp * feat_bytes
                        + Bp * Dp * in_bytes + Bp * 4))

    lse = pl.pallas_call(
        kernel,
        out_shape=jax.ShapeDtypeStruct((Bp, 1), jnp.float32),
        grid_spec=pltpu.PrefetchScalarGridSpec(
            num_scalar_prefetch=0,
            grid=(n_b_tiles, Np // TN),
            in_specs=[
                pl.BlockSpec((TB, Dp), lambda bi, ni: (bi, 0)),  # inputs (resident)
                pl.BlockSpec((TN, Dp), lambda bi, ni: (ni, 0)),  # features (streamed)
            ],
            out_specs=pl.BlockSpec((TB, 1), lambda bi, ni: (bi, 0)),
            scratch_shapes=[
                pltpu.VMEM((TB, Dp), f.dtype),      # hoisted x_n (1/temp folded)
                pltpu.VMEM((TB, 1), jnp.float32),   # running max
                pltpu.VMEM((TB, 1), jnp.float32),   # running sum-exp
            ],
        ),
        compiler_params=pltpu.CompilerParams(
            dimension_semantics=("parallel", "arbitrary"),
            vmem_limit_bytes=vmem_limit),
        cost_estimate=cost,
    )(x, f)

    # Per-row cross entropy = logsumexp - target_logit; mean over real rows.
    return jnp.mean(lse[:B, 0] - tgt_logit)


def _reference_forward(inputs, features, targets, temp=0.05):
    x = inputs / jnp.maximum(
        jnp.linalg.norm(inputs, axis=1, keepdims=True), 1e-12)
    logits = jnp.dot(x, features.T,
                     precision=jax.lax.Precision.HIGHEST) / temp
    logp = jax.nn.log_softmax(logits, axis=1)
    return -jnp.mean(logp[jnp.arange(inputs.shape[0]), targets])


if __name__ == "__main__":
    # Small shapes consistent with the module:
    #   batch B = 8, num_features = 32, num_samples (clusters) = 16
    B, D, N = 8, 32, 16
    temp = 0.05

    key = jax.random.PRNGKey(0)
    k_in, k_feat, k_tgt = jax.random.split(key, 3)

    inputs = jax.random.normal(k_in, (B, D), dtype=jnp.float32)
    # The module registers `features` as a zero buffer; initialize it
    # deterministically with unit-norm rows so the loss is non-trivial.
    feats = jax.random.normal(k_feat, (N, D), dtype=jnp.float32)
    feats = feats / jnp.linalg.norm(feats, axis=1, keepdims=True)
    targets = jax.random.randint(k_tgt, (B,), 0, N, dtype=jnp.int32)

    # Pad the persistent memory bank once (outside the training step).
    f_prep, n_valid, tn = prepare_features(feats, block_n=512)
    loss = cluster_memory_forward(inputs, f_prep, targets, temp=temp,
                                  block_n=tn, n_valid=n_valid)
    loss = jax.block_until_ready(loss)

    ref = _reference_forward(inputs, feats, targets, temp=temp)
    assert jnp.allclose(loss, ref, rtol=1e-3, atol=1e-3), (loss, ref)

    # bf16 feature-streaming path (production config on all generations):
    # intended precision trade-off vs. the f32 reference, so only a loose check.
    f_bf16, n_valid_b, tn_b = prepare_features(feats, block_n=512,
                                               dtype=jnp.bfloat16)
    loss_bf16 = jax.block_until_ready(
        cluster_memory_forward(inputs, f_bf16, targets, temp=temp,
                               block_n=tn_b, n_valid=n_valid_b))
    assert bool(jnp.isfinite(loss_bf16)), loss_bf16
    assert abs(float(loss_bf16) - float(ref)) < 0.5, (loss_bf16, ref)

    print("KERNEL_OK")
</pallas_src>

<mosaic_0001>
module attributes {stable_mosaic.version = 11 : i64} {
  func.func @_cluster_memory_kernel(%arg0: i32, %arg1: i32, %arg2: memref<8x128xf32, #tpu.memory_space<vmem>>, %arg3: memref<128x128xf32, #tpu.memory_space<vmem>>, %arg4: memref<8x1xf32, #tpu.memory_space<vmem>>, %arg5: memref<8x128xf32, #tpu.memory_space<vmem>>, %arg6: memref<8x1xf32, #tpu.memory_space<vmem>>, %arg7: memref<8x1xf32, #tpu.memory_space<vmem>>) attributes {dimension_semantics = [#tpu.dimension_semantics<parallel>, #tpu.dimension_semantics<arbitrary>], iteration_bounds = array<i64: 1, 1>, scalar_prefetch = 0 : i64, scratch_operands = 3 : i64, tpu.core_type = #tpu.core_type<tc>, window_params = [{transform_indices = @transform_0, window_bounds = array<i64: 8, 128>}, {transform_indices = @transform_1, window_bounds = array<i64: 128, 128>}, {transform_indices = @transform_2, window_bounds = array<i64: 8, 1>}]} {
    %c0_i32 = arith.constant 0 : i32
    %0 = arith.cmpi eq, %arg1, %c0_i32 : i32
    %1 = arith.extui %0 : i1 to i32
    %c0_i32_0 = arith.constant 0 : i32
    %2 = arith.cmpi ne, %1, %c0_i32_0 : i32
    scf.if %2 {
      %c0_17 = arith.constant 0 : index
      %c0_18 = arith.constant 0 : index
      %35 = vector.load %arg2[%c0_17, %c0_18] : memref<8x128xf32, #tpu.memory_space<vmem>>, vector<8x128xf32>
      %36 = arith.mulf %35, %35 : vector<8x128xf32>
      %cst_19 = arith.constant dense<0.000000e+00> : vector<8xf32>
      %37 = vector.multi_reduction <add>, %36, %cst_19 [1] : vector<8x128xf32> to vector<8xf32>
      %38 = vector.shape_cast %37 : vector<8xf32> to vector<8x1xf32>
      %cst_20 = arith.constant 1.000000e-24 : f32
      %39 = vector.broadcast %cst_20 : f32 to vector<8x1xf32>
      %40 = arith.maximumf %38, %39 : vector<8x1xf32>
      %41 = math.rsqrt %40 : vector<8x1xf32>
      %cst_21 = arith.constant 2.000000e+01 : f32
      %42 = vector.broadcast %cst_21 : f32 to vector<8x1xf32>
      %43 = arith.mulf %41, %42 : vector<8x1xf32>
      %44 = vector.broadcast %43 : vector<8x1xf32> to vector<8x128xf32>
      %45 = arith.mulf %35, %44 : vector<8x128xf32>
      %c0_22 = arith.constant 0 : index
      %c0_23 = arith.constant 0 : index
      %46 = vector.load %arg5[%c0_22, %c0_23] : memref<8x128xf32, #tpu.memory_space<vmem>>, vector<8x128xf32>
      tpu.vector_store %arg5[%c0_22, %c0_23], %45 {strides = array<i32>} : memref<8x128xf32, #tpu.memory_space<vmem>>, vector<8x128xf32>,
      %cst_24 = arith.constant 0xFF800000 : f32
      %47 = vector.broadcast %cst_24 : f32 to vector<8x1xf32>
      %c0_25 = arith.constant 0 : index
      %c0_26 = arith.constant 0 : index
      %48 = vector.load %arg6[%c0_25, %c0_26] : memref<8x1xf32, #tpu.memory_space<vmem>>, vector<8x1xf32>
      tpu.vector_store %arg6[%c0_25, %c0_26], %47 {strides = array<i32>} : memref<8x1xf32, #tpu.memory_space<vmem>>, vector<8x1xf32>,
      %cst_27 = arith.constant 0.000000e+00 : f32
      %49 = vector.broadcast %cst_27 : f32 to vector<8x1xf32>
      %c0_28 = arith.constant 0 : index
      %c0_29 = arith.constant 0 : index
      %50 = vector.load %arg7[%c0_28, %c0_29] : memref<8x1xf32, #tpu.memory_space<vmem>>, vector<8x1xf32>
      tpu.vector_store %arg7[%c0_28, %c0_29], %49 {strides = array<i32>} : memref<8x1xf32, #tpu.memory_space<vmem>>, vector<8x1xf32>,
    } else {
    }
    %c0 = arith.constant 0 : index
    %c0_1 = arith.constant 0 : index
    %3 = vector.load %arg5[%c0, %c0_1] : memref<8x128xf32, #tpu.memory_space<vmem>>, vector<8x128xf32>
    %c0_2 = arith.constant 0 : index
    %c0_3 = arith.constant 0 : index
    %4 = vector.load %arg3[%c0_2, %c0_3] : memref<128x128xf32, #tpu.memory_space<vmem>>, vector<128x128xf32>
    %cst = arith.constant dense<0.000000e+00> : vector<8x128xf32>
    %5 = tpu.matmul %3, %4, %cst {dimension_numbers = #tpu.dot_dimension_numbers<[1], [1], [0], [0], [0, 0, 1, 0], [], []>} : vector<8x128xf32>, vector<128x128xf32>, vector<8x128xf32> -> vector<8x128xf32>
    %c128_i32 = arith.constant 128 : i32
    %6 = arith.muli %arg1, %c128_i32 : i32
    %7 = tpu.iota {dimensions = array<i32: 1>} : vector<1x128xi32>
    %8 = vector.broadcast %6 : i32 to vector<1x128xi32>
    %9 = arith.addi %8, %7 : vector<1x128xi32>
    %c16_i32 = arith.constant 16 : i32
    %10 = vector.broadcast %c16_i32 : i32 to vector<1x128xi32>
    %11 = arith.cmpi slt, %9, %10 : vector<1x128xi32>
    %cst_4 = arith.constant 0xFF800000 : f32
    %12 = vector.shape_cast %11 : vector<1x128xi1> to vector<1x128xi1>
    %13 = vector.broadcast %12 : vector<1x128xi1> to vector<8x128xi1>
    %14 = vector.broadcast %cst_4 : f32 to vector<8x128xf32>
    %15 = arith.select %13, %5, %14 : vector<8x128xi1>, vector<8x128xf32>
    %c0_5 = arith.constant 0 : index
    %c0_6 = arith.constant 0 : index
    %16 = vector.load %arg6[%c0_5, %c0_6] : memref<8x1xf32, #tpu.memory_space<vmem>>, vector<8x1xf32>
    %cst_7 = arith.constant dense<0xFF800000> : vector<8xf32>
    %17 = vector.multi_reduction <maximumf>, %15, %cst_7 [1] : vector<8x128xf32> to vector<8xf32>
    %18 = vector.shape_cast %17 : vector<8xf32> to vector<8x1xf32>
    %19 = arith.maximumf %16, %18 : vector<8x1xf32>
    %20 = arith.subf %16, %19 : vector<8x1xf32>
    %21 = math.exp %20 : vector<8x1xf32>
    %c0_8 = arith.constant 0 : index
    %c0_9 = arith.constant 0 : index
    %22 = vector.load %arg7[%c0_8, %c0_9] : memref<8x1xf32, #tpu.memory_space<vmem>>, vector<8x1xf32>
    %23 = arith.mulf %21, %22 : vector<8x1xf32>
    %24 = vector.broadcast %19 : vector<8x1xf32> to vector<8x128xf32>
    %25 = arith.subf %15, %24 : vector<8x128xf32>
    %26 = math.exp %25 : vector<8x128xf32>
    %cst_10 = arith.constant dense<0.000000e+00> : vector<8xf32>
    %27 = vector.multi_reduction <add>, %26, %cst_10 [1] : vector<8x128xf32> to vector<8xf32>
    %28 = vector.shape_cast %27 : vector<8xf32> to vector<8x1xf32>
    %29 = arith.addf %23, %28 : vector<8x1xf32>
    %c0_11 = arith.constant 0 : index
    %c0_12 = arith.constant 0 : index
    %30 = vector.load %arg7[%c0_11, %c0_12] : memref<8x1xf32, #tpu.memory_space<vmem>>, vector<8x1xf32>
    tpu.vector_store %arg7[%c0_11, %c0_12], %29 {strides = array<i32>} : memref<8x1xf32, #tpu.memory_space<vmem>>, vector<8x1xf32>,
    %c0_13 = arith.constant 0 : index
    %c0_14 = arith.constant 0 : index
    %31 = vector.load %arg6[%c0_13, %c0_14] : memref<8x1xf32, #tpu.memory_space<vmem>>, vector<8x1xf32>
    tpu.vector_store %arg6[%c0_13, %c0_14], %19 {strides = array<i32>} : memref<8x1xf32, #tpu.memory_space<vmem>>, vector<8x1xf32>,
    %c0_i32_15 = arith.constant 0 : i32
    %32 = arith.cmpi eq, %arg1, %c0_i32_15 : i32
    %33 = arith.extui %32 : i1 to i32
    %c0_i32_16 = arith.constant 0 : i32
    %34 = arith.cmpi ne, %33, %c0_i32_16 : i32
    scf.if %34 {
      %c0_17 = arith.constant 0 : index
      %c0_18 = arith.constant 0 : index
      %35 = vector.load %arg6[%c0_17, %c0_18] : memref<8x1xf32, #tpu.memory_space<vmem>>, vector<8x1xf32>
      %c0_19 = arith.constant 0 : index
      %c0_20 = arith.constant 0 : index
      %36 = vector.load %arg7[%c0_19, %c0_20] : memref<8x1xf32, #tpu.memory_space<vmem>>, vector<8x1xf32>
      %37 = math.log %36 : vector<8x1xf32>
      %38 = arith.addf %35, %37 : vector<8x1xf32>
      %c0_21 = arith.constant 0 : index
      %c0_22 = arith.constant 0 : index
      %39 = vector.load %arg4[%c0_21, %c0_22] : memref<8x1xf32, #tpu.memory_space<vmem>>, vector<8x1xf32>
      tpu.vector_store %arg4[%c0_21, %c0_22], %38 {strides = array<i32>} : memref<8x1xf32, #tpu.memory_space<vmem>>, vector<8x1xf32>,
    } else {
    }
    return
  }
  func.func @transform_0(%arg0: i32, %arg1: i32) -> (i32, i32) {
    %c0_i32 = arith.constant 0 : i32
    %c0_i32_0 = arith.constant 0 : i32
    return %arg0, %c0_i32 : i32, i32
  }
  func.func @transform_1(%arg0: i32, %arg1: i32) -> (i32, i32) {
    %c0_i32 = arith.constant 0 : i32
    %c0_i32_0 = arith.constant 0 : i32
    return %arg1, %c0_i32 : i32, i32
  }
  func.func @transform_2(%arg0: i32, %arg1: i32) -> (i32, i32) {
    %c0_i32 = arith.constant 0 : i32
    %c0_i32_0 = arith.constant 0 : i32
    return %arg0, %c0_i32 : i32, i32
  }
}

</mosaic_0001>

<llo_original>
// kernel: tpu_custom_call.1
$region0: #{tpu_custom_call.1}
  #allocation0 [shape = 'u32[]', space=smem, size = 0x4, offset = 0x4, fixed_abs, tag = 'smem constant byte address 0x4 - core index']
  #allocation1 [shape = 'u32[144,128]{1,0:T(1,128)}', space=vmem, size = 0x12000, scoped, tag = 'internal scratch']
  #allocation2 [shape = 'f32[8,128]{1,0:T(8,128)}', space=vmem, size = 0x1000, scoped, tag = 'scratch operand']
  #allocation3 [shape = 'f32[8,1]{1,0:T(8,128)}', space=vmem, size = 0x1000, scoped, tag = 'scratch operand']
  #allocation4 [shape = 'f32[8,1]{1,0:T(8,128)}', space=vmem, size = 0x1000, scoped, tag = 'scratch operand']
  %s0 = inlined_call_operand.hbm [shape: f32[8,128], index: 0, kind: input, shape index: {}]
  %s1 = inlined_call_operand.hbm [shape: f32[128,128], index: 1, kind: input, shape index: {}]
  %s2 = inlined_call_operand.vmem [shape: f32[8,1], index: 2, kind: output, shape index: {}]
  %s3 = sld [smem:[#allocation0]]
  $region34: #{tpu_custom_call.1} parent=0
    _
  %s5 = ssub.s32 1, %s3
  %s6 = scalar_select 0, %s5, %s3
  $region1: #{tpu_custom_call.1} parent=0
    #allocation5 [shape = 'u8[4096]{0}', space=vmem, size = 0x1000, scoped, tag = 'input window, operand 0, single buffered']
    #allocation6 [shape = 's32[1]{0}', space=sflag, size = 0x4, scoped, tag = 'scoped memory for tpu_custom_call.1']
    #allocation7 [shape = 'u8[65536]{0}', space=vmem, size = 0x10000, scoped, tag = 'input window, operand 1, single buffered']
    #allocation8 [shape = 's32[1]{0}', space=sflag, size = 0x4, scoped, tag = 'scoped memory for tpu_custom_call.1']
    %7 = vsyncpa [#allocation6], 0
    %8 = vsyncpa [#allocation8], 0
    // Predicated region
    $region2: #{tpu_custom_call.1} parent=1 // pred_check
      _
    $region3: #{tpu_custom_call.1} parent=1 // pred_check_branch
      %10 = sbr.rel (0) target = $region5
    $region4: #{tpu_custom_call.1} parent=1 // pred_region
      %s12 = ssub.s32 128, 128
      %13 = vsyncadd [#allocation6], %s12
      %s15 = sshll.u32 [#allocation5], 4
      %s16 = int_to_ptr.vmem [resolvable:$true] %s15
      %18 = dma.hbm_to_vmem [thread:$0]  %s0, 128, %s16, [#allocation6]
    $region5: #{tpu_custom_call.1} parent=1 // pred_fallthru
      _
    // Predicated region
    $region6: #{tpu_custom_call.1} parent=1 // pred_check
      _
    $region7: #{tpu_custom_call.1} parent=1 // pred_check_branch
      %20 = sbr.rel (0) target = $region9
    $region8: #{tpu_custom_call.1} parent=1 // pred_region
      %s22 = ssub.s32 2048, 2048
      %23 = vsyncadd [#allocation8], %s22
      %s24 = sshll.u32 [#allocation7], 4
      %s25 = int_to_ptr.vmem [resolvable:$true] %s24
      %30 = dma.hbm_to_vmem [thread:$0]  %s1, 2048, %s25, [#allocation8], 128, 128, 8
    $region9: #{tpu_custom_call.1} parent=1 // pred_fallthru
      _
    // Predicated region
    $region10: #{tpu_custom_call.1} parent=1 // pred_check
      _
    $region11: #{tpu_custom_call.1} parent=1 // pred_check_branch
      %32 = sbr.rel (0) target = $region13
    $region12: #{tpu_custom_call.1} parent=1 // pred_region
      %33 = dma.done [#allocation6], 128
    $region13: #{tpu_custom_call.1} parent=1 // pred_fallthru
      _
    // Predicated region
    $region14: #{tpu_custom_call.1} parent=1 // pred_check
      _
    $region15: #{tpu_custom_call.1} parent=1 // pred_check_branch
      %35 = sbr.rel (0) target = $region17
    $region16: #{tpu_custom_call.1} parent=1 // pred_region
      %36 = dma.done [#allocation8], 2048
    $region17: #{tpu_custom_call.1} parent=1 // pred_fallthru
      _
    %p37 = scmp.eq.s32.totalorder 0, 0
    // Predicated region
    $region18: #{tpu_custom_call.1} parent=1 // pred_check
      %p38 = pneg %p37
    $region19: #{tpu_custom_call.1} parent=1 // pred_check_branch
      %40 = sbr.rel (%p38) target = $region21
    $region20: #{tpu_custom_call.1} parent=1 // pred_region
      %v41 = vld [vmem:[#allocation5] sm:$0xff]
      %v42 = vmul.f32 %v41, %v41
      %43 = vadd.xlane.f32.xlu0 %v42
      %v44 = vpop.xlane.xlu0 %43
      %v45 = vmax.f32 %v44, 1e-24
      %v46 = vrsqrt.pop %v45
      %v47 = vmul.f32 %v46, 20.0
      %v48 = vmul.f32 %v41, %v47
      %49 = vst [vmem:[#allocation2] sm:$0xff] %v48
      %vm50 = vcmask 7168
      %51 = vst.msk [vmem:[#allocation3] sm:$0xff] %vm50, -inf
      %52 = vst.msk [vmem:[#allocation4] sm:$0xff] %vm50, 0.0
    $region21: #{tpu_custom_call.1} parent=1 // pred_fallthru
      _
    %v53 = vld [vmem:[#allocation2] sm:$0xff]
    %v54 = vld [vmem:[#allocation7] sm:$0xff]
    %v55 = vld [vmem:[#allocation7 + $0x8] sm:$0xff]
    %v56 = vld [vmem:[#allocation7 + $0x10] sm:$0xff]
    %v57 = vld [vmem:[#allocation7 + $0x18] sm:$0xff]
    %v58 = vld [vmem:[#allocation7 + $0x20] sm:$0xff]
    %v59 = vld [vmem:[#allocation7 + $0x28] sm:$0xff]
    %v60 = vld [vmem:[#allocation7 + $0x30] sm:$0xff]
    %v61 = vld [vmem:[#allocation7 + $0x38] sm:$0xff]
    %v62 = vld [vmem:[#allocation7 + $0x40] sm:$0xff]
    %v63 = vld [vmem:[#allocation7 + $0x48] sm:$0xff]
    %v64 = vld [vmem:[#allocation7 + $0x50] sm:$0xff]
    %v65 = vld [vmem:[#allocation7 + $0x58] sm:$0xff]
    %v66 = vld [vmem:[#allocation7 + $0x60] sm:$0xff]
    %v67 = vld [vmem:[#allocation7 + $0x68] sm:$0xff]
    %v68 = vld [vmem:[#allocation7 + $0x70] sm:$0xff]
    %v69 = vld [vmem:[#allocation7 + $0x78] sm:$0xff]
    %70 = vmatprep.subr.mxu0 0.0
    %71 = vmatpush1.xpose.msra.mxu0 %v69
    %72 = vmatprep.subr.mxu0 0.0
    %73 = vmatpush1.xpose.msra.mxu0 %v68
    %74 = vmatprep.subr.mxu0 0.0
    %75 = vmatpush1.xpose.msra.mxu0 %v67
    %76 = vmatprep.subr.mxu0 0.0
    %77 = vmatpush1.xpose.msra.mxu0 %v66
    %78 = vmatprep.subr.mxu0 0.0
    %79 = vmatpush1.xpose.msra.mxu0 %v65
    %80 = vmatprep.subr.mxu0 0.0
    %81 = vmatpush1.xpose.msra.mxu0 %v64
    %82 = vmatprep.subr.mxu0 0.0
    %83 = vmatpush1.xpose.msra.mxu0 %v63
    %84 = vmatprep.subr.mxu0 0.0
    %85 = vmatpush1.xpose.msra.mxu0 %v62
    %86 = vmatprep.subr.mxu0 0.0
    %87 = vmatpush1.xpose.msra.mxu0 %v61
    %88 = vmatprep.subr.mxu0 0.0
    %89 = vmatpush1.xpose.msra.mxu0 %v60
    %90 = vmatprep.subr.mxu0 0.0
    %91 = vmatpush1.xpose.msra.mxu0 %v59
    %92 = vmatprep.subr.mxu0 0.0
    %93 = vmatpush1.xpose.msra.mxu0 %v58
    %94 = vmatprep.subr.mxu0 0.0
    %95 = vmatpush1.xpose.msra.mxu0 %v57
    %96 = vmatprep.subr.mxu0 0.0
    %97 = vmatpush1.xpose.msra.mxu0 %v56
    %98 = vmatprep.subr.mxu0 0.0
    %99 = vmatpush1.xpose.msra.mxu0 %v55
    %100 = vmatprep.subr.mxu0 0.0
    %101 = vmatpush1.xpose.msra.mxu0 %v54
    %102 = vmatprep.subr.mxu0 0.0
    %103 = vmatpush2.xpose.msra.mxu0 0.0
    %104 = vmatprep.subr.mxu0 0.0
    %105 = vmatpush2.xpose.msra.mxu0 0.0
    %106 = vmatprep.subr.mxu0 0.0
    %107 = vmatpush2.xpose.msra.mxu0 0.0
    %108 = vmatprep.subr.mxu0 0.0
    %109 = vmatpush2.xpose.msra.mxu0 0.0
    %110 = vmatprep.subr.mxu0 0.0
    %111 = vmatpush2.xpose.msra.mxu0 0.0
    %112 = vmatprep.subr.mxu0 0.0
    %113 = vmatpush2.xpose.msra.mxu0 0.0
    %114 = vmatprep.subr.mxu0 0.0
    %115 = vmatpush2.xpose.msra.mxu0 0.0
    %116 = vmatprep.subr.mxu0 0.0
    %117 = vmatpush2.xpose.msra.mxu0 0.0
    %118 = vmatprep.subr.mxu0 0.0
    %119 = vmatpush2.xpose.msra.mxu0 0.0
    %120 = vmatprep.subr.mxu0 0.0
    %121 = vmatpush2.xpose.msra.mxu0 0.0
    %122 = vmatprep.subr.mxu0 0.0
    %123 = vmatpush2.xpose.msra.mxu0 0.0
    %124 = vmatprep.subr.mxu0 0.0
    %125 = vmatpush2.xpose.msra.mxu0 0.0
    %126 = vmatprep.subr.mxu0 0.0
    %127 = vmatpush2.xpose.msra.mxu0 0.0
    %128 = vmatprep.subr.mxu0 0.0
    %129 = vmatpush2.xpose.msra.mxu0 0.0
    %130 = vmatprep.subr.mxu0 0.0
    %131 = vmatpush2.xpose.msra.mxu0 0.0
    %132 = vmatprep.subr.mxu0 0.0
    %133 = vmatpush2.xpose.msra.mxu0 0.0
    %134 = vmatprep.mubr.f32.mxu0 0.0
    %135 = vmatmul.mubr.f32.gmra.mxu0 %v53
    %v136 = vpop.f32.mrf.mxu0
    %v137 = vadd.f32 0.0, %v136
    %v138 = vpop.f32.mrf.mxu0
    %139 = vdwg.mxu0
    %s140 = smul.u32 0, 128
    %v141 = vlaneseq
    %v142 = vand.u32 %v141, 127
    %v143 = vstv %s140
    %v144 = vadd.s32 %v143, %v142
    %vm145 = vcmp.lt.s32.totalorder %v144, 16
    %v146 = vsel %vm145, 1, 0
    %vm147 = vcmp.eq.s32.totalorder %v146, 1
    %v148 = vsel %vm147, %v137, -inf
    %v149 = vld [vmem:[#allocation3] sm:$0xff]
    %150 = vmax.xlane.f32.xlu0 %v148
    %v151 = vpop.xlane.xlu0 %150
    %v152 = vmax.f32 %v149, %v151
    %v153 = vsub.f32 %v149, %v152
    %v154 = vmul.f32 %v153, 1.442695
    %v155 = vpow.pop %v154
    %v156 = vld [vmem:[#allocation4] sm:$0xff]
    %v157 = vmul.f32 %v155, %v156
    %159 = vset.pattern.permute.xlu0 0
    %160 = vperm.xlu0 %159, %v152
    %v161 = vpop.permute.xlu0 %160
    %v163 = vsub.f32 %v148, %v161
    %v164 = vmul.f32 %v163, 1.442695
    %v165 = vpow.pop %v164
    %166 = vadd.xlane.f32.xlu0 %v165
    %v167 = vpop.xlane.xlu0 %166
    %v168 = vadd.f32 %v157, %v167
    %vm169 = vcmask 7168
    %170 = vst.msk [vmem:[#allocation4] sm:$0xff] %vm169, %v168
    %171 = vst.msk [vmem:[#allocation3] sm:$0xff] %vm169, %v152
    // Predicated region
    $region22: #{tpu_custom_call.1} parent=1 // pred_check
      %p172 = pneg %p37
    $region23: #{tpu_custom_call.1} parent=1 // pred_check_branch
      %174 = sbr.rel (%p172) target = $region25
    $region24: #{tpu_custom_call.1} parent=1 // pred_region
      %v175 = vld [vmem:[#allocation3] sm:$0xff]
      %v176 = vld [vmem:[#allocation4] sm:$0xff]
      %v177 = vlog2.pop %v176
      %v178 = vmul.f32 %v177, 0.6931472
      %v179 = vadd.f32 %v175, %v178
      %180 = vst.msk [vmem:[%s2] sm:$0xff] %vm169, %v179
    $region25: #{tpu_custom_call.1} parent=1 // pred_fallthru
      _
    // Predicated region
    $region26: #{tpu_custom_call.1} parent=1 // pred_check
      _
    $region27: #{tpu_custom_call.1} parent=1 // pred_check_branch
      %182 = sbr.rel (0) target = $region29
    $region28: #{tpu_custom_call.1} parent=1 // pred_region
      _
    $region29: #{tpu_custom_call.1} parent=1 // pred_fallthru
      _
    // Predicated region
    $region30: #{tpu_custom_call.1} parent=1 // pred_check
      _
    $region31: #{tpu_custom_call.1} parent=1 // pred_check_branch
      %184 = sbr.rel (0) target = $region33
    $region32: #{tpu_custom_call.1} parent=1 // pred_region
      _
    $region33: #{tpu_custom_call.1} parent=1 // pred_fallthru
      _
    %185 = vsyncpa [#allocation6], 1
    %186 = vsyncpa [#allocation8], 1

</llo_original>
